<compile_context>
chip_gen: v5e
topology: v5e:2x2
jax: 0.10.0
libtpu: 0.0.40
codegen_flags: <defaults>
</compile_context>

<pallas_src>
import functools

import jax
import jax.numpy as jnp
from jax.experimental import pallas as pl
from jax.experimental.pallas import tpu as pltpu

_LANE = 128
_SUBLANE = 8


def _round_up(x, m):
    return ((x + m - 1) // m) * m


def _detect_num_tensorcores():
    # v7x exposes 2 TensorCores per chip; v5e/v6e have 1. Fall back to 1 if unsure.
    try:
        kind = jax.devices()[0].device_kind.lower()
    except Exception:
        return 1
    return 2 if "v7" in kind else 1


def _binary_kd_kernel(s_ref, t_ref, o_ref, *, inv_T, nb, has_core_axis):
    i = pl.program_id(1) if has_core_axis else pl.program_id(0)  # reduction axis

    @pl.when(i == 0)
    def _():
        o_ref[...] = jnp.zeros_like(o_ref)

    s = s_ref[...].astype(jnp.float32) * inv_T
    t = t_ref[...].astype(jnp.float32) * inv_T

    # Numerically stable log-sigmoid / sigmoid: 2 exp + 2 log1p on the EUP plus one
    # approximate reciprocal (cheap EUP slot) refined by a single Newton step.
    e_s = jnp.exp(-jnp.abs(s))                      # in (0, 1], never overflows
    e_t = jnp.exp(-jnp.abs(t))
    log_p_s = jnp.minimum(s, 0.0) - jnp.log1p(e_s)  # log_sigmoid(s / T)
    log_p_t = jnp.minimum(t, 0.0) - jnp.log1p(e_t)  # log_sigmoid(t / T)
    den = 1.0 + e_t                                 # in [1, 2]
    r = pl.reciprocal(den, approx=True)
    r = r * (2.0 - den * r)                         # one Newton step -> ~f32 accuracy
    p_t = jnp.where(t >= 0.0, 1.0, e_t) * r         # sigmoid(t / T)

    elt = p_t * (log_p_t - log_p_s)

    # Fold the (br, 128) block into the resident (8, 128) output accumulator with
    # pure vreg adds (br % 8 == 0, so the reshape is layout-preserving; no XLU work
    # in the hot loop). Final cross-sublane/lane reduce happens in the XLA epilogue.
    o_ref[...] += jnp.sum(elt.reshape(-1, _SUBLANE, _LANE), axis=0)


def binary_kd_loss(s_out, t_out, kl_loss_factor=1.0, T=1.0,
                   block_rows=4096, num_cores=None):
    """Pallas implementation of BinaryKDLoss.forward. Returns a scalar f32."""
    s_flat = jnp.reshape(s_out, (-1,))
    t_flat = jnp.reshape(t_out, (-1,))
    assert s_flat.shape == t_flat.shape, (s_flat.shape, t_flat.shape)
    n = s_flat.shape[0]
    if n == 0:
        return jnp.float32(0.0)

    if num_cores is None:
        num_cores = _detect_num_tensorcores()

    rows = pl.cdiv(n, _LANE)                        # 128-lane rows (pre-padding)
    nc = 2 if (num_cores >= 2 and rows >= 2 * _SUBLANE) else 1
    rows_per_core = pl.cdiv(rows, nc)

    # Block size: sweep knob; cap at 8192 rows (16 MiB of double-buffered f32
    # inputs) so the pipeline comfortably fits v7x's 64 MiB VMEM too.
    br_cap = max(_SUBLANE, min(int(block_rows), 8192))
    nb = max(1, pl.cdiv(rows_per_core, br_cap))
    br = _round_up(pl.cdiv(rows_per_core, nb), _SUBLANE)
    rows_padded = nc * nb * br

    # Exact host padding with zeros (each padded element contributes exactly 0), so
    # the kernel needs no per-element mask and never re-reads a block.
    total = rows_padded * _LANE
    pad = total - n
    if pad:
        s_flat = jnp.pad(s_flat, (0, pad))
        t_flat = jnp.pad(t_flat, (0, pad))
    s2 = s_flat.reshape(rows_padded, _LANE)         # contiguous reshape, native dtype
    t2 = t_flat.reshape(rows_padded, _LANE)

    kernel = functools.partial(
        _binary_kd_kernel, inv_T=1.0 / float(T), nb=nb, has_core_axis=(nc == 2))

    if nc == 2:
        # v7x megacore: leading axis is a real per-TensorCore split.
        grid = (nc, nb)
        in_spec = pl.BlockSpec((br, _LANE), lambda c, i: (c * nb + i, 0))
        out_spec = pl.BlockSpec((_SUBLANE, _LANE), lambda c, i: (c, 0))
        dim_sem = (pltpu.CORE_PARALLEL, pltpu.ARBITRARY)
    else:
        # v5e / v6e: single TensorCore, skip the core axis entirely.
        grid = (nb,)
        in_spec = pl.BlockSpec((br, _LANE), lambda i: (i, 0))
        out_spec = pl.BlockSpec((_SUBLANE, _LANE), lambda i: (0, 0))
        dim_sem = ("arbitrary",)

    partials = pl.pallas_call(
        kernel,
        out_shape=jax.ShapeDtypeStruct((nc * _SUBLANE, _LANE), jnp.float32),
        grid_spec=pltpu.PrefetchScalarGridSpec(
            num_scalar_prefetch=0,
            grid=grid,
            in_specs=[in_spec, in_spec],
            out_specs=out_spec,
        ),
        compiler_params=pltpu.CompilerParams(
            dimension_semantics=dim_sem,
            vmem_limit_bytes=32 * 1024 * 1024),
    )(s2, t2)

    # batchmean (divide by the un-padded N), * T^2 * kl_loss_factor — applied once.
    scale = float(T) * float(T) * float(kl_loss_factor) / float(n)
    return jnp.sum(partials) * scale


def _reference(s_out, t_out, kl_loss_factor=1.0, T=1.0):
    s = jnp.asarray(s_out, jnp.float32).reshape(-1)
    t = jnp.asarray(t_out, jnp.float32).reshape(-1)
    log_p_s = jax.nn.log_sigmoid(s / T)
    p_t = jax.nn.sigmoid(t / T)
    kl = jnp.sum(p_t * (jnp.log(p_t) - log_p_s)) / s.shape[0]
    return kl * T * T * kl_loss_factor


if __name__ == "__main__":
    key = jax.random.PRNGKey(0)
    k1, k2 = jax.random.split(key)
    # Student / teacher binary logits, e.g. per-pixel predictions in NCHW.
    s_out = jax.random.normal(k1, (2, 4, 16, 16), dtype=jnp.float32)
    t_out = jax.random.normal(k2, (2, 4, 16, 16), dtype=jnp.float32)

    T = 2.0
    factor = 0.5

    loss = binary_kd_loss(s_out, t_out, kl_loss_factor=factor, T=T)
    loss = jax.block_until_ready(loss)

    ref = _reference(s_out, t_out, kl_loss_factor=factor, T=T)
    assert jnp.allclose(loss, ref, rtol=1e-3, atol=1e-4), (loss, ref)

    print("KERNEL_OK")
</pallas_src>

<mosaic_0001>
module attributes {stable_mosaic.version = 11 : i64} {
  func.func @_binary_kd_kernel(%arg0: i32, %arg1: memref<16x128xf32, #tpu.memory_space<vmem>>, %arg2: memref<16x128xf32, #tpu.memory_space<vmem>>, %arg3: memref<8x128xf32, #tpu.memory_space<vmem>>) attributes {dimension_semantics = [#tpu.dimension_semantics<arbitrary>], iteration_bounds = array<i64: 1>, scalar_prefetch = 0 : i64, scratch_operands = 0 : i64, tpu.core_type = #tpu.core_type<tc>, window_params = [{transform_indices = @transform_0, window_bounds = array<i64: 16, 128>}, {transform_indices = @transform_1, window_bounds = array<i64: 16, 128>}, {pipeline_mode = #tpu.pipeline_mode<synchronous>, transform_indices = @transform_2, window_bounds = array<i64: 8, 128>}]} {
    %c0_i32 = arith.constant 0 : i32
    %0 = arith.cmpi eq, %arg0, %c0_i32 : i32
    %1 = arith.extui %0 : i1 to i32
    %c0_i32_0 = arith.constant 0 : i32
    %2 = arith.cmpi ne, %1, %c0_i32_0 : i32
    scf.if %2 {
      %cst_18 = arith.constant 0.000000e+00 : f32
      %44 = vector.broadcast %cst_18 : f32 to vector<8x128xf32>
      %c0_19 = arith.constant 0 : index
      %c0_20 = arith.constant 0 : index
      %45 = vector.load %arg3[%c0_19, %c0_20] : memref<8x128xf32, #tpu.memory_space<vmem>>, vector<8x128xf32>
      tpu.vector_store %arg3[%c0_19, %c0_20], %44 {strides = array<i32>} : memref<8x128xf32, #tpu.memory_space<vmem>>, vector<8x128xf32>,
    } else {
    }
    %c0 = arith.constant 0 : index
    %c0_1 = arith.constant 0 : index
    %3 = vector.load %arg1[%c0, %c0_1] : memref<16x128xf32, #tpu.memory_space<vmem>>, vector<16x128xf32>
    %cst = arith.constant 5.000000e-01 : f32
    %4 = vector.broadcast %cst : f32 to vector<16x128xf32>
    %5 = arith.mulf %3, %4 : vector<16x128xf32>
    %c0_2 = arith.constant 0 : index
    %c0_3 = arith.constant 0 : index
    %6 = vector.load %arg2[%c0_2, %c0_3] : memref<16x128xf32, #tpu.memory_space<vmem>>, vector<16x128xf32>
    %cst_4 = arith.constant 5.000000e-01 : f32
    %7 = vector.broadcast %cst_4 : f32 to vector<16x128xf32>
    %8 = arith.mulf %6, %7 : vector<16x128xf32>
    %9 = math.absf %5 : vector<16x128xf32>
    %cst_5 = arith.constant 0.000000e+00 : f32
    %10 = vector.broadcast %cst_5 : f32 to vector<16x128xf32>
    %11 = arith.subf %10, %9 : vector<16x128xf32>
    %12 = math.exp %11 : vector<16x128xf32>
    %13 = math.absf %8 : vector<16x128xf32>
    %cst_6 = arith.constant 0.000000e+00 : f32
    %14 = vector.broadcast %cst_6 : f32 to vector<16x128xf32>
    %15 = arith.subf %14, %13 : vector<16x128xf32>
    %16 = math.exp %15 : vector<16x128xf32>
    %cst_7 = arith.constant 0.000000e+00 : f32
    %17 = vector.broadcast %cst_7 : f32 to vector<16x128xf32>
    %18 = arith.minimumf %5, %17 : vector<16x128xf32>
    %19 = math.log1p %12 : vector<16x128xf32>
    %20 = arith.subf %18, %19 : vector<16x128xf32>
    %cst_8 = arith.constant 0.000000e+00 : f32
    %21 = vector.broadcast %cst_8 : f32 to vector<16x128xf32>
    %22 = arith.minimumf %8, %21 : vector<16x128xf32>
    %23 = math.log1p %16 : vector<16x128xf32>
    %24 = arith.subf %22, %23 : vector<16x128xf32>
    %cst_9 = arith.constant 1.000000e+00 : f32
    %25 = vector.broadcast %cst_9 : f32 to vector<16x128xf32>
    %26 = arith.addf %25, %16 : vector<16x128xf32>
    %27 = tpu.reciprocal %26 {approx = true} : vector<16x128xf32> -> vector<16x128xf32>
    %28 = arith.mulf %26, %27 : vector<16x128xf32>
    %cst_10 = arith.constant 2.000000e+00 : f32
    %29 = vector.broadcast %cst_10 : f32 to vector<16x128xf32>
    %30 = arith.subf %29, %28 : vector<16x128xf32>
    %31 = arith.mulf %27, %30 : vector<16x128xf32>
    %cst_11 = arith.constant 0.000000e+00 : f32
    %32 = vector.broadcast %cst_11 : f32 to vector<16x128xf32>
    %33 = arith.cmpf oge, %8, %32 : vector<16x128xf32>
    %cst_12 = arith.constant 1.000000e+00 : f32
    %34 = vector.broadcast %cst_12 : f32 to vector<16x128xf32>
    %35 = arith.select %33, %34, %16 : vector<16x128xi1>, vector<16x128xf32>
    %36 = arith.mulf %35, %31 : vector<16x128xf32>
    %37 = arith.subf %24, %20 : vector<16x128xf32>
    %38 = arith.mulf %36, %37 : vector<16x128xf32>
    %c0_13 = arith.constant 0 : index
    %c0_14 = arith.constant 0 : index
    %39 = vector.load %arg3[%c0_13, %c0_14] : memref<8x128xf32, #tpu.memory_space<vmem>>, vector<8x128xf32>
    %40 = vector.shape_cast %38 : vector<16x128xf32> to vector<2x8x128xf32>
    %cst_15 = arith.constant dense<0.000000e+00> : vector<8x128xf32>
    %41 = vector.multi_reduction <add>, %40, %cst_15 [0] : vector<2x8x128xf32> to vector<8x128xf32>
    %42 = arith.addf %39, %41 : vector<8x128xf32>
    %c0_16 = arith.constant 0 : index
    %c0_17 = arith.constant 0 : index
    %43 = vector.load %arg3[%c0_16, %c0_17] : memref<8x128xf32, #tpu.memory_space<vmem>>, vector<8x128xf32>
    tpu.vector_store %arg3[%c0_16, %c0_17], %42 {strides = array<i32>} : memref<8x128xf32, #tpu.memory_space<vmem>>, vector<8x128xf32>,
    return
  }
  func.func @transform_0(%arg0: i32) -> (i32, i32) {
    %c0_i32 = arith.constant 0 : i32
    %c0_i32_0 = arith.constant 0 : i32
    return %arg0, %c0_i32 : i32, i32
  }
  func.func @transform_1(%arg0: i32) -> (i32, i32) {
    %c0_i32 = arith.constant 0 : i32
    %c0_i32_0 = arith.constant 0 : i32
    return %arg0, %c0_i32 : i32, i32
  }
  func.func @transform_2(%arg0: i32) -> (i32, i32) {
    %c0_i32 = arith.constant 0 : i32
    %c0_i32_0 = arith.constant 0 : i32
    %c0_i32_1 = arith.constant 0 : i32
    return %c0_i32, %c0_i32_0 : i32, i32
  }
}

</mosaic_0001>

<llo_original>
// kernel: tpu_custom_call.1
$region0: #{tpu_custom_call.1}
  #allocation0 [shape = 'u32[]', space=smem, size = 0x4, offset = 0x4, fixed_abs, tag = 'smem constant byte address 0x4 - core index']
  #allocation1 [shape = 'u32[72,128]{1,0:T(1,128)}', space=vmem, size = 0x9000, scoped, tag = 'internal scratch']
  %s0 = inlined_call_operand.hbm [shape: f32[16,128], index: 0, kind: input, shape index: {}]
  %s1 = inlined_call_operand.hbm [shape: f32[16,128], index: 1, kind: input, shape index: {}]
  %s2 = inlined_call_operand.hbm [shape: f32[8,128], index: 2, kind: output, shape index: {}]
  %s3 = sld [smem:[#allocation0]]
  $region30: #{tpu_custom_call.1} parent=0
    _
  %s5 = ssub.s32 1, %s3
  %s6 = scalar_select 0, %s5, %s3
  $region1: #{tpu_custom_call.1} parent=0
    #allocation2 [shape = 'u8[8192]{0}', space=vmem, size = 0x2000, scoped, tag = 'input window, operand 0, single buffered']
    #allocation3 [shape = 's32[1]{0}', space=sflag, size = 0x4, scoped, tag = 'scoped memory for tpu_custom_call.1']
    #allocation4 [shape = 's32[1]{0}', space=sflag, size = 0x4, scoped, tag = 'scoped memory for tpu_custom_call.1']
    #allocation5 [shape = 'u8[8192]{0}', space=vmem, size = 0x2000, scoped, tag = 'input window, operand 1, single buffered']
    #allocation6 [shape = 's32[1]{0}', space=sflag, size = 0x4, scoped, tag = 'scoped memory for tpu_custom_call.1']
    #allocation7 [shape = 'u8[4096]{0}', space=vmem, size = 0x1000, scoped, tag = 'output window, operand 0, single buffered']
    %7 = vsyncpa [#allocation3], 0
    %8 = vsyncpa [#allocation6], 0
    %9 = vsyncpa [#allocation4], 0
    // Predicated region
    $region2: #{tpu_custom_call.1} parent=1 // pred_check
      _
    $region3: #{tpu_custom_call.1} parent=1 // pred_check_branch
      %11 = sbr.rel (0) target = $region5
    $region4: #{tpu_custom_call.1} parent=1 // pred_region
      %13 = vsyncadd [#allocation3], 0
      %s14 = sshll.u32 %s0, 4
      %s15 = int_to_ptr.hbm [resolvable:$true] %s14
      %s16 = sshll.u32 [#allocation2], 4
      %s17 = int_to_ptr.vmem [resolvable:$true] %s16
      %22 = dma.hbm_to_vmem [thread:$0]  %s15, 256, %s17, [#allocation3], 128, 128, 8
    $region5: #{tpu_custom_call.1} parent=1 // pred_fallthru
      _
    // Predicated region
    $region6: #{tpu_custom_call.1} parent=1 // pred_check
      _
    $region7: #{tpu_custom_call.1} parent=1 // pred_check_branch
      %24 = sbr.rel (0) target = $region9
    $region8: #{tpu_custom_call.1} parent=1 // pred_region
      %26 = vsyncadd [#allocation6], 0
      %s27 = sshll.u32 %s1, 4
      %s28 = int_to_ptr.hbm [resolvable:$true] %s27
      %s29 = sshll.u32 [#allocation5], 4
      %s30 = int_to_ptr.vmem [resolvable:$true] %s29
      %35 = dma.hbm_to_vmem [thread:$0]  %s28, 256, %s30, [#allocation6], 128, 128, 8
    $region9: #{tpu_custom_call.1} parent=1 // pred_fallthru
      _
    // Predicated region
    $region10: #{tpu_custom_call.1} parent=1 // pred_check
      _
    $region11: #{tpu_custom_call.1} parent=1 // pred_check_branch
      %37 = sbr.rel (0) target = $region13
    $region12: #{tpu_custom_call.1} parent=1 // pred_region
      %39 = dma.done [#allocation3], 256
    $region13: #{tpu_custom_call.1} parent=1 // pred_fallthru
      _
    // Predicated region
    $region14: #{tpu_custom_call.1} parent=1 // pred_check
      _
    $region15: #{tpu_custom_call.1} parent=1 // pred_check_branch
      %41 = sbr.rel (0) target = $region17
    $region16: #{tpu_custom_call.1} parent=1 // pred_region
      %43 = dma.done [#allocation6], 256
    $region17: #{tpu_custom_call.1} parent=1 // pred_fallthru
      _
    %p44 = scmp.eq.s32.totalorder 0, 0
    // Predicated region
    $region18: #{tpu_custom_call.1} parent=1 // pred_check
      %p45 = pneg %p44
    $region19: #{tpu_custom_call.1} parent=1 // pred_check_branch
      %47 = sbr.rel (%p45) target = $region21
    $region20: #{tpu_custom_call.1} parent=1 // pred_region
      %48 = vst [vmem:[#allocation7] sm:$0xff] 0.0
    $region21: #{tpu_custom_call.1} parent=1 // pred_fallthru
      _
    %v49 = vld [vmem:[#allocation2] sm:$0xff]
    %v50 = vld [vmem:[#allocation2 + $0x8] sm:$0xff]
    %v51 = vmul.f32 %v49, 0.5
    %v52 = vmul.f32 %v50, 0.5
    %v53 = vld [vmem:[#allocation5] sm:$0xff]
    %v54 = vld [vmem:[#allocation5 + $0x8] sm:$0xff]
    %v55 = vmul.f32 %v53, 0.5
    %v56 = vmul.f32 %v54, 0.5
    %v57 = vand.u32 2147483647, %v51
    %v58 = vand.u32 2147483647, %v52
    %v59 = vsub.f32 0.0, %v57
    %v60 = vsub.f32 0.0, %v58
    %v61 = vmul.f32 %v59, 1.442695
    %v62 = vpow.pop %v61
    %v63 = vmul.f32 %v60, 1.442695
    %v64 = vpow.pop %v63
    %v65 = vand.u32 2147483647, %v55
    %v66 = vand.u32 2147483647, %v56
    %v67 = vsub.f32 0.0, %v65
    %v68 = vsub.f32 0.0, %v66
    %v69 = vmul.f32 %v67, 1.442695
    %v70 = vpow.pop %v69
    %v71 = vmul.f32 %v68, 1.442695
    %v72 = vpow.pop %v71
    %v73 = vmin.f32 %v51, 0.0
    %v74 = vmin.f32 %v52, 0.0
    %v75 = vadd.f32 %v62, 1.0
    %v76 = vlog2.pop %v75
    %v77 = vmul.f32 %v76, 0.6931472
    %v78 = vmul.f32 -0.5, %v62
    %v79 = vadd.f32 %v78, 1.0
    %v80 = vmul.f32 %v79, %v62
    %v81 = vand.u32 2147483647, %v62
    %vm82 = vcmp.lt.f32.partialorder %v81, 0.0004427343
    %v83 = vsel %vm82, %v80, %v77
    %v84 = vadd.f32 %v64, 1.0
    %v85 = vlog2.pop %v84
    %v86 = vmul.f32 %v85, 0.6931472
    %v87 = vmul.f32 -0.5, %v64
    %v88 = vadd.f32 %v87, 1.0
    %v89 = vmul.f32 %v88, %v64
    %v90 = vand.u32 2147483647, %v64
    %vm91 = vcmp.lt.f32.partialorder %v90, 0.0004427343
    %v92 = vsel %vm91, %v89, %v86
    %v93 = vsub.f32 %v73, %v83
    %v94 = vsub.f32 %v74, %v92
    %v95 = vmin.f32 %v55, 0.0
    %v96 = vmin.f32 %v56, 0.0
    %v97 = vadd.f32 %v70, 1.0
    %v98 = vlog2.pop %v97
    %v99 = vmul.f32 %v98, 0.6931472
    %v100 = vmul.f32 -0.5, %v70
    %v101 = vadd.f32 %v100, 1.0
    %v102 = vmul.f32 %v101, %v70
    %v103 = vand.u32 2147483647, %v70
    %vm104 = vcmp.lt.f32.partialorder %v103, 0.0004427343
    %v105 = vsel %vm104, %v102, %v99
    %v106 = vadd.f32 %v72, 1.0
    %v107 = vlog2.pop %v106
    %v108 = vmul.f32 %v107, 0.6931472
    %v109 = vmul.f32 -0.5, %v72
    %v110 = vadd.f32 %v109, 1.0
    %v111 = vmul.f32 %v110, %v72
    %v112 = vand.u32 2147483647, %v72
    %vm113 = vcmp.lt.f32.partialorder %v112, 0.0004427343
    %v114 = vsel %vm113, %v111, %v108
    %v115 = vsub.f32 %v95, %v105
    %v116 = vsub.f32 %v96, %v114
    %v117 = vadd.f32 %v70, 1.0
    %v118 = vadd.f32 %v72, 1.0
    %v119 = vrcp.pop %v117
    %v120 = vrcp.pop %v118
    %v121 = vmul.f32 %v117, %v119
    %v122 = vmul.f32 %v118, %v120
    %v123 = vsub.f32 2.0, %v121
    %v124 = vsub.f32 2.0, %v122
    %v125 = vmul.f32 %v119, %v123
    %v126 = vmul.f32 %v120, %v124
    %vm127 = vcmp.ge.f32.partialorder %v55, 0.0
    %vm128 = vcmp.ge.f32.partialorder %v56, 0.0
    %v129 = vsel %vm127, 1.0, %v70
    %v130 = vsel %vm128, 1.0, %v72
    %v131 = vmul.f32 %v129, %v125
    %v132 = vmul.f32 %v130, %v126
    %v133 = vsub.f32 %v115, %v93
    %v134 = vsub.f32 %v116, %v94
    %v135 = vmul.f32 %v131, %v133
    %v136 = vmul.f32 %v132, %v134
    %v137 = vld [vmem:[#allocation7] sm:$0xff]
    %v138 = vadd.f32 %v135, %v136
    %v139 = vadd.f32 %v137, %v138
    %140 = vst [vmem:[#allocation7] sm:$0xff] %v139
    // Predicated region
    $region22: #{tpu_custom_call.1} parent=1 // pred_check
      _
    $region23: #{tpu_custom_call.1} parent=1 // pred_check_branch
      %142 = sbr.rel (0) target = $region25
    $region24: #{tpu_custom_call.1} parent=1 // pred_region
      %144 = vsyncadd [#allocation4], 0
      %s146 = sshll.u32 [#allocation7], 4
      %s147 = int_to_ptr.vmem [resolvable:$true] %s146
      %s148 = sshll.u32 %s2, 4
      %s149 = int_to_ptr.hbm [resolvable:$true] %s148
      %151 = dma.vmem_to_hbm [thread:$0]  %s147, 128, %s149, [#allocation4]
    $region25: #{tpu_custom_call.1} parent=1 // pred_fallthru
      _
    // Predicated region
    $region26: #{tpu_custom_call.1} parent=1 // pred_check
      _
    $region27: #{tpu_custom_call.1} parent=1 // pred_check_branch
      %153 = sbr.rel (0) target = $region29
    $region28: #{tpu_custom_call.1} parent=1 // pred_region
      %155 = dma.done [#allocation4], 128
    $region29: #{tpu_custom_call.1} parent=1 // pred_fallthru
      _
    %156 = vsyncpa [#allocation3], 1
    %157 = vsyncpa [#allocation6], 1
    %158 = vsyncpa [#allocation4], 1

</llo_original>
